<compile_context>
chip_gen: v5e
topology: v5e:2x2
jax: 0.10.0
libtpu: 0.0.40
codegen_flags: <defaults>
</compile_context>

<pallas_src>
import functools

import jax
import jax.numpy as jnp
from jax.experimental import pallas as pl
from jax.experimental.pallas import tpu as pltpu


def _round_up(x: int, m: int) -> int:
    return (x + m - 1) // m * m


def soft_attention_kernel(feat_ref, h_ref, we_ref, wd_ref, b_ref, wt_ref,
                          wf_ref, alpha_ref, *, l_chunk):
    # feat_ref: (TN, L, D) native dtype  |  h_ref: (TN, n)
    # we_ref: (D, A)  wd_ref: (n, A)     |  b_ref / wt_ref: (1, A) f32
    tn, l_len, d_dim = feat_ref.shape
    a_dim = we_ref.shape[1]

    # decoder_att + folded (b_enc + b_dec): add the bias once on (TN, A)
    # instead of on the broadcasted (TN, Lc, A) tensor.
    att2 = jnp.dot(h_ref[...], wd_ref[...],
                   preferred_element_type=jnp.float32) + b_ref[...]   # (TN, A)

    wt_row = wt_ref[...]                                              # (1, A)

    # ---- pass 1 (chunked over L): scores, never materializing (TN, L, A) ----
    score_chunks = []
    for s in range(0, l_len, l_chunk):
        c = min(l_chunk, l_len - s)
        fc = feat_ref[:, s:s + c, :]                       # (TN, c, D) native
        att1 = jnp.dot(fc.reshape(tn * c, d_dim), we_ref[...],
                       preferred_element_type=jnp.float32
                       ).reshape(tn, c, a_dim)
        att = jnp.maximum(att1 + att2[:, None, :], 0.0)
        # total_att has out_features == 1: VPU multiply + XLU lane reduce beats
        # a 1-wide MXU matmul.  b_tot omitted (softmax shift invariance).
        score_chunks.append(jnp.sum(att * wt_row[None, :, :], axis=-1))
    scores = (score_chunks[0] if len(score_chunks) == 1
              else jnp.concatenate(score_chunks, axis=1))             # (TN, L)

    # Softmax over L.  Exact divide: the denominator is only (TN, 1).
    m = jnp.max(scores, axis=1, keepdims=True)
    e = jnp.exp(scores - m)
    alpha = e / jnp.sum(e, axis=1, keepdims=True)                     # (TN, L)
    alpha_ref[...] = alpha.astype(alpha_ref.dtype)

    # ---- pass 2 (chunked over L): weighted_feature = sum_L feature * alpha --
    acc = jnp.zeros((tn, d_dim), jnp.float32)
    for s in range(0, l_len, l_chunk):
        c = min(l_chunk, l_len - s)
        fc = feat_ref[:, s:s + c, :]
        acc = acc + jnp.sum(fc * alpha[:, s:s + c, None], axis=1)
    wf_ref[...] = acc.astype(wf_ref.dtype)


def _choose_batch_tile(n_total, granule, per_row_bytes, resident_bytes,
                       budget_bytes):
    """Largest batch tile that fits the VMEM budget, prefers a divisor of N
    (no batch-padding HBM copy) and keeps >=2 grid steps when N allows."""
    if n_total <= granule:
        return n_total, 1                      # single full-extent block
    avail = max(per_row_bytes * granule, budget_bytes - resident_bytes)
    tn_max = int((avail // per_row_bytes) // granule * granule)
    tn_max = max(granule, min(tn_max, 1024))
    tn_max = min(tn_max, _round_up(n_total, granule))
    if n_total >= 2 * granule:                 # keep >=2 steps (dual-TC v7x)
        tn_max = min(tn_max, _round_up((n_total + 1) // 2, granule))
    tn_max = max(granule, tn_max)
    tn = None
    t = tn_max
    while t >= granule:
        if n_total % t == 0:                   # largest divisor tile wins
            tn = t
            break
        t -= granule
    if tn is None:
        tn = tn_max                            # padding copy unavoidable
    steps = -(-n_total // tn)
    return tn, steps


def soft_attention(feature, prev_h, w_enc, b_enc, w_dec, b_dec, w_tot, b_tot,
                   *, l_chunk=32):
    """feature: (N, L, D), prev_h: (N, n).  Linear weights stored (in, out)."""
    N, L, D = feature.shape
    n_hid = prev_h.shape[1]
    A = w_enc.shape[1]
    del b_tot            # softmax shift invariance: cannot change alpha/output

    dt = feature.dtype
    itemsize = jnp.dtype(dt).itemsize
    granule = max(8, 8 * (4 // itemsize))      # packed-sublane granule 8/16/32
    lc = max(1, min(l_chunk, L))

    # Matmul weights (and h) in the feature dtype -> full-rate MXU for bf16
    # nets; bias / total-att rows stay f32 (tiny, combine with f32 accums).
    we = w_enc.astype(dt)
    wd = w_dec.astype(dt)
    h_in = prev_h.astype(dt)
    b = (b_enc + b_dec).astype(jnp.float32).reshape(1, A)
    wt = w_tot[:, 0].astype(jnp.float32).reshape(1, A)

    # Generation-aware VMEM budgeting (v7x: 64 MiB/TC; v5e/v6e: 128 MiB).
    try:
        vmem_cap = int(pltpu.get_tpu_info().vmem_capacity_bytes)
    except Exception:
        vmem_cap = 64 << 20
    budget = max(8 << 20, (vmem_cap * 3) // 8)           # ~24 MiB v7x, ~48 v6e
    vmem_limit = int(min((vmem_cap * 3) // 4, 100 << 20))

    per_row = (3 * L * D * itemsize            # feature tile (<=3-deep buffers)
               + 2 * n_hid * itemsize          # prev_h (double-buffered)
               + 2 * lc * A * 4                # per-chunk att1 / relu (f32)
               + 2 * (L + D) * 4               # scores/alpha + f32 accumulator
               + 2 * (L + D) * itemsize)       # outputs (double-buffered)
    resident = (D + n_hid) * A * itemsize + 2 * A * 4

    tn, steps = _choose_batch_tile(N, granule, per_row, resident, budget)
    n_pad = tn * steps

    feature_in = feature
    if n_pad != N:
        # Rare batch-remainder path: pad only the batch dim so each grid step
        # sees a full tile.  L and D are never padded.
        # TODO(synk): switch to a cdiv grid with a masked last block to avoid
        # this HBM copy entirely.
        feature_in = jnp.zeros((n_pad, L, D), dt).at[:N].set(feature)
        h_in = jnp.zeros((n_pad, n_hid), dt).at[:N].set(h_in)

    feat_spec = pl.BlockSpec((tn, L, D), lambda i: (i, 0, 0))
    if steps >= 3:
        try:   # deeper feature pipelining once the grid is long enough
            feat_spec = pl.BlockSpec((tn, L, D), lambda i: (i, 0, 0),
                                     pipeline_mode=pl.Buffered(3))
        except TypeError:
            pass

    kernel = functools.partial(soft_attention_kernel, l_chunk=lc)

    wf, alpha = pl.pallas_call(
        kernel,
        grid=(steps,),
        in_specs=[
            feat_spec,                                       # feature tile
            pl.BlockSpec((tn, n_hid), lambda i: (i, 0)),     # prev_h tile
            pl.BlockSpec((D, A), lambda i: (0, 0)),          # w_enc (resident)
            pl.BlockSpec((n_hid, A), lambda i: (0, 0)),      # w_dec (resident)
            pl.BlockSpec((1, A), lambda i: (0, 0)),          # fused bias row
            pl.BlockSpec((1, A), lambda i: (0, 0)),          # total_att row
        ],
        out_specs=(
            pl.BlockSpec((tn, D), lambda i: (i, 0)),         # weighted_feature
            pl.BlockSpec((tn, L), lambda i: (i, 0)),         # alpha
        ),
        out_shape=(
            jax.ShapeDtypeStruct((n_pad, D), dt),
            jax.ShapeDtypeStruct((n_pad, L), dt),
        ),
        compiler_params=pltpu.CompilerParams(
            dimension_semantics=("parallel",),
            vmem_limit_bytes=vmem_limit,
        ),
    )(feature_in, h_in, we, wd, b, wt)

    return wf[:N], alpha[:N]


def soft_attention_ref(feature, prev_h, w_enc, b_enc, w_dec, b_dec, w_tot, b_tot):
    att1 = feature @ w_enc + b_enc                      # (N, L, A)
    att2 = prev_h @ w_dec + b_dec                       # (N, A)
    att = jax.nn.relu(att1 + att2[:, None, :])          # (N, L, A)
    scores = (att @ w_tot + b_tot)[..., 0]              # (N, L)
    alpha = jax.nn.softmax(scores, axis=1)
    weighted = (feature * alpha[:, :, None]).sum(axis=1)
    return weighted, alpha


if __name__ == "__main__":
    # Small shapes consistent with the module's forward:
    #   feature: (N, L, D), prev_h: (N, n), attention_dim = A
    N, L, D, n, A = 2, 8, 32, 16, 32

    key = jax.random.PRNGKey(0)
    kf, kh, k1, k2, k3, k4, k5, k6 = jax.random.split(key, 8)

    feature = jax.random.normal(kf, (N, L, D), dtype=jnp.float32)
    prev_h = jax.random.normal(kh, (N, n), dtype=jnp.float32)

    # Deterministic synthetic parameters (shapes from nn.Linear in __init__),
    # stored (in_features, out_features) so x @ W + b == torch Linear(x).
    w_enc = jax.random.normal(k1, (D, A), dtype=jnp.float32) * 0.1
    b_enc = jax.random.normal(k2, (A,), dtype=jnp.float32) * 0.1
    w_dec = jax.random.normal(k3, (n, A), dtype=jnp.float32) * 0.1
    b_dec = jax.random.normal(k4, (A,), dtype=jnp.float32) * 0.1
    w_tot = jax.random.normal(k5, (A, 1), dtype=jnp.float32) * 0.1
    b_tot = jax.random.normal(k6, (1,), dtype=jnp.float32) * 0.1

    weighted, alpha = soft_attention(feature, prev_h,
                                     w_enc, b_enc, w_dec, b_dec, w_tot, b_tot)
    jax.block_until_ready((weighted, alpha))

    w_ref, a_ref = soft_attention_ref(feature, prev_h,
                                      w_enc, b_enc, w_dec, b_dec, w_tot, b_tot)
    assert jnp.allclose(alpha, a_ref, atol=1e-3, rtol=1e-3), "alpha mismatch"
    assert jnp.allclose(weighted, w_ref, atol=1e-3, rtol=1e-3), "weighted mismatch"

    print("KERNEL_OK")
</pallas_src>

<mosaic_0001>
module attributes {stable_mosaic.version = 11 : i64} {
  func.func @soft_attention_kernel(%arg0: i32, %arg1: memref<2x8x32xf32, #tpu.memory_space<vmem>>, %arg2: memref<2x16xf32, #tpu.memory_space<vmem>>, %arg3: memref<32x32xf32, #tpu.memory_space<vmem>>, %arg4: memref<16x32xf32, #tpu.memory_space<vmem>>, %arg5: memref<1x32xf32, #tpu.memory_space<vmem>>, %arg6: memref<1x32xf32, #tpu.memory_space<vmem>>, %arg7: memref<2x32xf32, #tpu.memory_space<vmem>>, %arg8: memref<2x8xf32, #tpu.memory_space<vmem>>) attributes {dimension_semantics = [#tpu.dimension_semantics<parallel>], iteration_bounds = array<i64: 1>, scalar_prefetch = 0 : i64, scratch_operands = 0 : i64, tpu.core_type = #tpu.core_type<tc>, window_params = [{transform_indices = @transform_0, window_bounds = array<i64: 2, 8, 32>}, {transform_indices = @transform_1, window_bounds = array<i64: 2, 16>}, {pipeline_mode = #tpu.pipeline_mode<synchronous>, transform_indices = @transform_2, window_bounds = array<i64: 32, 32>}, {pipeline_mode = #tpu.pipeline_mode<synchronous>, transform_indices = @transform_3, window_bounds = array<i64: 16, 32>}, {pipeline_mode = #tpu.pipeline_mode<synchronous>, transform_indices = @transform_4, window_bounds = array<i64: 1, 32>}, {pipeline_mode = #tpu.pipeline_mode<synchronous>, transform_indices = @transform_5, window_bounds = array<i64: 1, 32>}, {transform_indices = @transform_6, window_bounds = array<i64: 2, 32>}, {transform_indices = @transform_7, window_bounds = array<i64: 2, 8>}]} {
    %c0 = arith.constant 0 : index
    %c0_0 = arith.constant 0 : index
    %0 = vector.load %arg2[%c0, %c0_0] : memref<2x16xf32, #tpu.memory_space<vmem>>, vector<2x16xf32>
    %c0_1 = arith.constant 0 : index
    %c0_2 = arith.constant 0 : index
    %1 = vector.load %arg4[%c0_1, %c0_2] : memref<16x32xf32, #tpu.memory_space<vmem>>, vector<16x32xf32>
    %cst = arith.constant dense<0.000000e+00> : vector<2x32xf32>
    %2 = tpu.matmul %0, %1, %cst {dimension_numbers = #tpu.dot_dimension_numbers<[1], [0], [0], [1], [0, 0, 1, 1], [], []>} : vector<2x16xf32>, vector<16x32xf32>, vector<2x32xf32> -> vector<2x32xf32>
    %c0_3 = arith.constant 0 : index
    %c0_4 = arith.constant 0 : index
    %3 = vector.load %arg5[%c0_3, %c0_4] : memref<1x32xf32, #tpu.memory_space<vmem>>, vector<1x32xf32>
    %4 = vector.broadcast %3 : vector<1x32xf32> to vector<2x32xf32>
    %5 = arith.addf %2, %4 : vector<2x32xf32>
    %c0_5 = arith.constant 0 : index
    %c0_6 = arith.constant 0 : index
    %6 = vector.load %arg6[%c0_5, %c0_6] : memref<1x32xf32, #tpu.memory_space<vmem>>, vector<1x32xf32>
    %c0_7 = arith.constant 0 : index
    %c0_8 = arith.constant 0 : index
    %c0_9 = arith.constant 0 : index
    %7 = vector.load %arg1[%c0_7, %c0_8, %c0_9] : memref<2x8x32xf32, #tpu.memory_space<vmem>>, vector<2x8x32xf32>
    %8 = vector.shape_cast %7 : vector<2x8x32xf32> to vector<16x32xf32>
    %c0_10 = arith.constant 0 : index
    %c0_11 = arith.constant 0 : index
    %9 = vector.load %arg3[%c0_10, %c0_11] : memref<32x32xf32, #tpu.memory_space<vmem>>, vector<32x32xf32>
    %cst_12 = arith.constant dense<0.000000e+00> : vector<16x32xf32>
    %10 = tpu.matmul %8, %9, %cst_12 {dimension_numbers = #tpu.dot_dimension_numbers<[1], [0], [0], [1], [0, 0, 1, 1], [], []>} : vector<16x32xf32>, vector<32x32xf32>, vector<16x32xf32> -> vector<16x32xf32>
    %11 = vector.shape_cast %10 : vector<16x32xf32> to vector<2x8x32xf32>
    %12 = vector.shape_cast %5 : vector<2x32xf32> to vector<2x1x32xf32>
    %13 = vector.broadcast %12 : vector<2x1x32xf32> to vector<2x8x32xf32>
    %14 = arith.addf %11, %13 : vector<2x8x32xf32>
    %cst_13 = arith.constant 0.000000e+00 : f32
    %15 = vector.broadcast %cst_13 : f32 to vector<2x8x32xf32>
    %16 = arith.maximumf %14, %15 : vector<2x8x32xf32>
    %17 = vector.shape_cast %6 : vector<1x32xf32> to vector<1x1x32xf32>
    %18 = vector.broadcast %17 : vector<1x1x32xf32> to vector<2x8x32xf32>
    %19 = arith.mulf %16, %18 : vector<2x8x32xf32>
    %cst_14 = arith.constant dense<0.000000e+00> : vector<2x8xf32>
    %20 = vector.multi_reduction <add>, %19, %cst_14 [2] : vector<2x8x32xf32> to vector<2x8xf32>
    %cst_15 = arith.constant dense<0xFF800000> : vector<2xf32>
    %21 = vector.multi_reduction <maximumf>, %20, %cst_15 [1] : vector<2x8xf32> to vector<2xf32>
    %22 = vector.shape_cast %21 : vector<2xf32> to vector<2x1xf32>
    %23 = vector.broadcast %22 : vector<2x1xf32> to vector<2x8xf32>
    %24 = arith.subf %20, %23 : vector<2x8xf32>
    %25 = math.exp %24 : vector<2x8xf32>
    %cst_16 = arith.constant dense<0.000000e+00> : vector<2xf32>
    %26 = vector.multi_reduction <add>, %25, %cst_16 [1] : vector<2x8xf32> to vector<2xf32>
    %27 = vector.shape_cast %26 : vector<2xf32> to vector<2x1xf32>
    %28 = vector.broadcast %27 : vector<2x1xf32> to vector<2x8xf32>
    %29 = arith.divf %25, %28 : vector<2x8xf32>
    %c0_17 = arith.constant 0 : index
    %c0_18 = arith.constant 0 : index
    %30 = vector.load %arg8[%c0_17, %c0_18] : memref<2x8xf32, #tpu.memory_space<vmem>>, vector<2x8xf32>
    tpu.vector_store %arg8[%c0_17, %c0_18], %29 {strides = array<i32>} : memref<2x8xf32, #tpu.memory_space<vmem>>, vector<2x8xf32>,
    %cst_19 = arith.constant 0.000000e+00 : f32
    %31 = vector.broadcast %cst_19 : f32 to vector<2x32xf32>
    %c0_20 = arith.constant 0 : index
    %c0_21 = arith.constant 0 : index
    %c0_22 = arith.constant 0 : index
    %32 = vector.load %arg1[%c0_20, %c0_21, %c0_22] : memref<2x8x32xf32, #tpu.memory_space<vmem>>, vector<2x8x32xf32>
    %33 = vector.shape_cast %29 : vector<2x8xf32> to vector<2x8x1xf32>
    %34 = vector.broadcast %33 : vector<2x8x1xf32> to vector<2x8x32xf32>
    %35 = arith.mulf %32, %34 : vector<2x8x32xf32>
    %cst_23 = arith.constant dense<0.000000e+00> : vector<2x32xf32>
    %36 = vector.multi_reduction <add>, %35, %cst_23 [1] : vector<2x8x32xf32> to vector<2x32xf32>
    %37 = arith.addf %31, %36 : vector<2x32xf32>
    %c0_24 = arith.constant 0 : index
    %c0_25 = arith.constant 0 : index
    %38 = vector.load %arg7[%c0_24, %c0_25] : memref<2x32xf32, #tpu.memory_space<vmem>>, vector<2x32xf32>
    tpu.vector_store %arg7[%c0_24, %c0_25], %37 {strides = array<i32>} : memref<2x32xf32, #tpu.memory_space<vmem>>, vector<2x32xf32>,
    return
  }
  func.func @transform_0(%arg0: i32) -> (i32, i32, i32) {
    %c0_i32 = arith.constant 0 : i32
    %c0_i32_0 = arith.constant 0 : i32
    %c0_i32_1 = arith.constant 0 : i32
    return %arg0, %c0_i32, %c0_i32_0 : i32, i32, i32
  }
  func.func @transform_1(%arg0: i32) -> (i32, i32) {
    %c0_i32 = arith.constant 0 : i32
    %c0_i32_0 = arith.constant 0 : i32
    return %arg0, %c0_i32 : i32, i32
  }
  func.func @transform_2(%arg0: i32) -> (i32, i32) {
    %c0_i32 = arith.constant 0 : i32
    %c0_i32_0 = arith.constant 0 : i32
    %c0_i32_1 = arith.constant 0 : i32
    return %c0_i32, %c0_i32_0 : i32, i32
  }
  func.func @transform_3(%arg0: i32) -> (i32, i32) {
    %c0_i32 = arith.constant 0 : i32
    %c0_i32_0 = arith.constant 0 : i32
    %c0_i32_1 = arith.constant 0 : i32
    return %c0_i32, %c0_i32_0 : i32, i32
  }
  func.func @transform_4(%arg0: i32) -> (i32, i32) {
    %c0_i32 = arith.constant 0 : i32
    %c0_i32_0 = arith.constant 0 : i32
    %c0_i32_1 = arith.constant 0 : i32
    return %c0_i32, %c0_i32_0 : i32, i32
  }
  func.func @transform_5(%arg0: i32) -> (i32, i32) {
    %c0_i32 = arith.constant 0 : i32
    %c0_i32_0 = arith.constant 0 : i32
    %c0_i32_1 = arith.constant 0 : i32
    return %c0_i32, %c0_i32_0 : i32, i32
  }
  func.func @transform_6(%arg0: i32) -> (i32, i32) {
    %c0_i32 = arith.constant 0 : i32
    %c0_i32_0 = arith.constant 0 : i32
    return %arg0, %c0_i32 : i32, i32
  }
  func.func @transform_7(%arg0: i32) -> (i32, i32) {
    %c0_i32 = arith.constant 0 : i32
    %c0_i32_0 = arith.constant 0 : i32
    return %arg0, %c0_i32 : i32, i32
  }
}

</mosaic_0001>

<llo_original>
// kernel: tpu_custom_call.1
$region0: #{tpu_custom_call.1}
  #allocation0 [shape = 'u32[]', space=smem, size = 0x4, offset = 0x4, fixed_abs, tag = 'smem constant byte address 0x4 - core index']
  #allocation1 [shape = 'u32[72,128]{1,0:T(1,128)}', space=vmem, size = 0x9000, scoped, tag = 'internal scratch']
  %s0 = inlined_call_operand.hbm [shape: f32[2,8,32], index: 0, kind: input, shape index: {}]
  %s1 = inlined_call_operand.hbm [shape: f32[2,16], index: 1, kind: input, shape index: {}]
  %s2 = inlined_call_operand.hbm [shape: f32[32,32], index: 2, kind: input, shape index: {}]
  %s3 = inlined_call_operand.hbm [shape: f32[16,32], index: 3, kind: input, shape index: {}]
  %s4 = inlined_call_operand.vmem [shape: f32[1,32], index: 4, kind: input, shape index: {}]
  %s5 = inlined_call_operand.vmem [shape: f32[1,32], index: 5, kind: input, shape index: {}]
  %s6 = inlined_call_operand.hbm [shape: f32[2,32], index: 6, kind: output, shape index: {0}]
  %s7 = inlined_call_operand.hbm [shape: f32[2,8], index: 7, kind: output, shape index: {1}]
  %8 = xla_tuple %s6, %s7
  %s9 = sld [smem:[#allocation0]]
  $region58: #{tpu_custom_call.1} parent=0
    _
  %s11 = ssub.s32 1, %s9
  %s12 = scalar_select 0, %s11, %s9
  $region1: #{tpu_custom_call.1} parent=0
    #allocation2 [shape = 'u8[8192]{0}', space=vmem, size = 0x2000, scoped, tag = 'input window, operand 0, single buffered']
    #allocation3 [shape = 's32[1]{0}', space=sflag, size = 0x4, scoped, tag = 'scoped memory for tpu_custom_call.1']
    #allocation4 [shape = 's32[1]{0}', space=sflag, size = 0x4, scoped, tag = 'scoped memory for tpu_custom_call.1']
    #allocation5 [shape = 'u8[1024]{0}', space=vmem, size = 0x400, scoped, tag = 'input window, operand 1, single buffered']
    #allocation6 [shape = 's32[1]{0}', space=sflag, size = 0x4, scoped, tag = 'scoped memory for tpu_custom_call.1']
    #allocation7 [shape = 'u8[16384]{0}', space=vmem, size = 0x4000, scoped, tag = 'input window, operand 2, single buffered']
    #allocation8 [shape = 'u8[8192]{0}', space=vmem, size = 0x2000, scoped, tag = 'input window, operand 3, single buffered']
    #allocation9 [shape = 's32[1]{0}', space=sflag, size = 0x4, scoped, tag = 'scoped memory for tpu_custom_call.1']
    #allocation10 [shape = 'u8[1024]{0}', space=vmem, size = 0x400, scoped, tag = 'output window, operand 0, single buffered']
    #allocation11 [shape = 'u8[1024]{0}', space=vmem, size = 0x400, scoped, tag = 'output window, operand 1, single buffered']
    #allocation12 [shape = 's32[1]{0}', space=sflag, size = 0x4, scoped, tag = 'scoped memory for tpu_custom_call.1']
    %13 = vsyncpa [#allocation3], 0
    %14 = vsyncpa [#allocation6], 0
    %15 = vsyncpa [#allocation9], 0
    %16 = vsyncpa [#allocation4], 0
    %17 = vsyncpa [#allocation12], 0
    // Predicated region
    $region2: #{tpu_custom_call.1} parent=1 // pred_check
      _
    $region3: #{tpu_custom_call.1} parent=1 // pred_check_branch
      %19 = sbr.rel (0) target = $region5
    $region4: #{tpu_custom_call.1} parent=1 // pred_region
      %21 = vsyncadd [#allocation3], 0
      %s22 = sshll.u32 %s0, 4
      %s23 = int_to_ptr.hbm [resolvable:$true] %s22
      %s24 = sshll.u32 [#allocation2], 4
      %s25 = int_to_ptr.vmem [resolvable:$true] %s24
      %30 = dma.hbm_to_vmem [thread:$0]  %s23, 256, %s25, [#allocation3], 128, 128, 8
    $region5: #{tpu_custom_call.1} parent=1 // pred_fallthru
      _
    // Predicated region
    $region6: #{tpu_custom_call.1} parent=1 // pred_check
      _
    $region7: #{tpu_custom_call.1} parent=1 // pred_check_branch
      %32 = sbr.rel (0) target = $region9
    $region8: #{tpu_custom_call.1} parent=1 // pred_region
      %34 = vsyncadd [#allocation6], 0
      %s36 = sshll.u32 %s1, 4
      %s37 = int_to_ptr.hbm [resolvable:$true] %s36
      %s38 = sshll.u32 [#allocation5], 4
      %s39 = int_to_ptr.vmem [resolvable:$true] %s38
      %41 = dma.hbm_to_vmem [thread:$0]  %s37, 32, %s39, [#allocation6]
    $region9: #{tpu_custom_call.1} parent=1 // pred_fallthru
      _
    // Predicated region
    $region10: #{tpu_custom_call.1} parent=1 // pred_check
      _
    $region11: #{tpu_custom_call.1} parent=1 // pred_check_branch
      %43 = sbr.rel (0) target = $region13
    $region12: #{tpu_custom_call.1} parent=1 // pred_region
      %45 = vsyncadd [#allocation6], 0
      %s46 = sshll.u32 %s2, 4
      %s47 = int_to_ptr.hbm [resolvable:$true] %s46
      %s48 = sshll.u32 [#allocation7], 4
      %s49 = int_to_ptr.vmem [resolvable:$true] %s48
      %54 = dma.hbm_to_vmem [thread:$0]  %s47, 512, %s49, [#allocation6], 128, 128, 8
    $region13: #{tpu_custom_call.1} parent=1 // pred_fallthru
      _
    // Predicated region
    $region14: #{tpu_custom_call.1} parent=1 // pred_check
      _
    $region15: #{tpu_custom_call.1} parent=1 // pred_check_branch
      %56 = sbr.rel (0) target = $region17
    $region16: #{tpu_custom_call.1} parent=1 // pred_region
      %58 = vsyncadd [#allocation9], 0
      %s59 = sshll.u32 %s3, 4
      %s60 = int_to_ptr.hbm [resolvable:$true] %s59
      %s61 = sshll.u32 [#allocation8], 4
      %s62 = int_to_ptr.vmem [resolvable:$true] %s61
      %67 = dma.hbm_to_vmem [thread:$0]  %s60, 256, %s62, [#allocation9], 128, 128, 8
    $region17: #{tpu_custom_call.1} parent=1 // pred_fallthru
      _
    // Predicated region
    $region18: #{tpu_custom_call.1} parent=1 // pred_check
      _
    $region19: #{tpu_custom_call.1} parent=1 // pred_check_branch
      %69 = sbr.rel (0) target = $region21
    $region20: #{tpu_custom_call.1} parent=1 // pred_region
      _
    $region21: #{tpu_custom_call.1} parent=1 // pred_fallthru
      _
    // Predicated region
    $region22: #{tpu_custom_call.1} parent=1 // pred_check
      _
    $region23: #{tpu_custom_call.1} parent=1 // pred_check_branch
      %71 = sbr.rel (0) target = $region25
    $region24: #{tpu_custom_call.1} parent=1 // pred_region
      _
    $region25: #{tpu_custom_call.1} parent=1 // pred_fallthru
      _
    // Predicated region
    $region26: #{tpu_custom_call.1} parent=1 // pred_check
      _
    $region27: #{tpu_custom_call.1} parent=1 // pred_check_branch
      %73 = sbr.rel (0) target = $region29
    $region28: #{tpu_custom_call.1} parent=1 // pred_region
      %75 = dma.done [#allocation3], 256
    $region29: #{tpu_custom_call.1} parent=1 // pred_fallthru
      _
    // Predicated region
    $region30: #{tpu_custom_call.1} parent=1 // pred_check
      _
    $region31: #{tpu_custom_call.1} parent=1 // pred_check_branch
      %77 = sbr.rel (0) target = $region33
    $region32: #{tpu_custom_call.1} parent=1 // pred_region
      %79 = dma.done [#allocation6], 32
    $region33: #{tpu_custom_call.1} parent=1 // pred_fallthru
      _
    // Predicated region
    $region34: #{tpu_custom_call.1} parent=1 // pred_check
      _
    $region35: #{tpu_custom_call.1} parent=1 // pred_check_branch
      %81 = sbr.rel (0) target = $region37
    $region36: #{tpu_custom_call.1} parent=1 // pred_region
      %83 = dma.done [#allocation6], 512
    $region37: #{tpu_custom_call.1} parent=1 // pred_fallthru
      _
    // Predicated region
    $region38: #{tpu_custom_call.1} parent=1 // pred_check
      _
    $region39: #{tpu_custom_call.1} parent=1 // pred_check_branch
      %85 = sbr.rel (0) target = $region41
    $region40: #{tpu_custom_call.1} parent=1 // pred_region
      %87 = dma.done [#allocation9], 256
    $region41: #{tpu_custom_call.1} parent=1 // pred_fallthru
      _
    %v88 = vld [vmem:[#allocation5] sm:$0x3]
    %v89 = vld [vmem:[#allocation8] sm:$0xff]
    %v90 = vld [vmem:[#allocation8 + $0x8] sm:$0xff]
    %v91 = vld [vmem:[%s4] sm:$0x1]
    %v93 = vperm.slane %v91, 0
    %vm95 = vcmask 130048
    %v97 = vsel %vm95, %v88, 0
    %99 = vmatpush.msra.mxu0 0.0
    %100 = vmatpush.msra.mxu0 0.0
    %101 = vmatpush.msra.mxu0 0.0
    %102 = vmatpush.msra.mxu0 0.0
    %103 = vmatpush.msra.mxu0 0.0
    %104 = vmatpush.msra.mxu0 0.0
    %105 = vmatpush.msra.mxu0 0.0
    %106 = vmatpush.msra.mxu0 0.0
    %107 = vmatpush.msra.mxu0 0.0
    %108 = vmatpush.msra.mxu0 0.0
    %109 = vmatpush.msra.mxu0 0.0
    %110 = vmatpush.msra.mxu0 0.0
    %111 = vmatpush.msra.mxu0 0.0
    %112 = vmatpush.msra.mxu0 0.0
    %113 = vmatpush.msra.mxu0 %v90
    %114 = vmatpush.msra.mxu0 %v89
    %115 = vmatmul.f32.gmra.mxu0 %v97
    %v116 = vpop.f32.mrf.mxu0
    %v117 = vadd.f32 %v93, %v116
    %118 = vdwg.mxu0
    %v119 = vld [vmem:[%s5] sm:$0x1]
    %v120 = vld [vmem:[#allocation2] sm:$0xff]
    %v121 = vld [vmem:[#allocation2 + $0x8] sm:$0xff]
    %v122 = vld [vmem:[#allocation7] sm:$0xff]
    %v123 = vld [vmem:[#allocation7 + $0x8] sm:$0xff]
    %v124 = vld [vmem:[#allocation7 + $0x10] sm:$0xff]
    %v125 = vld [vmem:[#allocation7 + $0x18] sm:$0xff]
    %vm126 = vcmask 261120
    %v128 = vsel %vm126, %v120, 0
    %v131 = vsel %vm126, %v121, 0
    %133 = vmatpush.msra.mxu0 0.0
    %134 = vmatpush.msra.mxu0 0.0
    %135 = vmatpush.msra.mxu0 0.0
    %136 = vmatpush.msra.mxu0 0.0
    %137 = vmatpush.msra.mxu0 0.0
    %138 = vmatpush.msra.mxu0 0.0
    %139 = vmatpush.msra.mxu0 0.0
    %140 = vmatpush.msra.mxu0 0.0
    %141 = vmatpush.msra.mxu0 0.0
    %142 = vmatpush.msra.mxu0 0.0
    %143 = vmatpush.msra.mxu0 0.0
    %144 = vmatpush.msra.mxu0 0.0
    %145 = vmatpush.msra.mxu0 %v125
    %146 = vmatpush.msra.mxu0 %v124
    %147 = vmatpush.msra.mxu0 %v123
    %148 = vmatpush.msra.mxu0 %v122
    %149 = vmatmul.f32.gmra.mxu0 %v128
    %v150 = vpop.f32.mrf.mxu0
    %v151 = vadd.f32 0.0, %v150
    %152 = vmatmul.f32.gmra.mxu0 %v131
    %v153 = vpop.f32.mrf.mxu0
    %v154 = vadd.f32 0.0, %v153
    %155 = vdwg.mxu0
    %v157 = vrot.slane %v117, 1
    %v158 = vperm.slane %v117, 0
    %v159 = vperm.slane %v157, 0
    %v162 = vadd.f32 %v151, %v158
    %v163 = vadd.f32 %v154, %v159
    %v164 = vmax.f32 %v162, 0.0
    %v165 = vmax.f32 %v163, 0.0
    %v167 = vperm.slane %v119, 0
    %v169 = vmul.f32 %v164, %v167
    %v170 = vmul.f32 %v165, %v167
    %v171 = vsel %vm126, %v169, 0.0
    %172 = vadd.xlane.f32.xlu0 %v171
    %v173 = vpop.xlane.xlu0 %172
    %v174 = vsel %vm126, %v170, 0.0
    %175 = vadd.xlane.f32.xlu0 %v174
    %v176 = vpop.xlane.xlu0 %175
    %v179 = vlaneseq
    %v180 = vand.u32 %v179, 127
    %v181 = vperm.slane %v173, %v180
    %v182 = vperm.slane %v176, %v180
    %vm183 = vcmask 1041409
    %v184 = vsel %vm183, %v182, %v181
    %vm186 = vcmask 58368
    %v187 = vsel %vm186, %v184, -inf
    %188 = vmax.xlane.f32.xlu0 %v187
    %v189 = vpop.xlane.xlu0 %188
    %v191 = vperm.slane %v189, 0
    %v192 = vperm.slane %v189, 1
    %v195 = vsub.f32 %v173, %v191
    %v196 = vsub.f32 %v176, %v192
    %v197 = vmul.f32 %v195, 1.442695
    %v198 = vpow.pop %v197
    %v199 = vmul.f32 %v196, 1.442695
    %v200 = vpow.pop %v199
    %203 = vset.pattern.permute.xlu0 0
    %204 = vperm.xlu0 %203, %v198
    %v205 = vpop.permute.xlu0 %204
    %206 = vset.pattern.permute.xlu0 0
    %207 = vperm.xlu0 %206, %v200
    %v208 = vpop.permute.xlu0 %207
    %v209 = vperm.slane %v205, %v180
    %v210 = vperm.slane %v208, %v180
    %v211 = vsel %vm183, %v210, %v209
    %v213 = vsel %vm186, %v211, 0.0
    %214 = vadd.xlane.f32.xlu0 %v213
    %v215 = vpop.xlane.xlu0 %214
    %v217 = vperm.slane %v215, 0
    %v218 = vperm.slane %v215, 1
    %v221 = vrcp.pop %v217
    %v222 = vmul.f32 %v217, %v221
    %v223 = vsub.f32 1.0, %v222
    %v224 = vmul.f32 %v221, %v223
    %v225 = vadd.f32 %v221, %v224
    %vm226 = vweird.f32 %v217
    %vm227 = vweird.f32 %v221
    %vm228 = vmor %vm226, %vm227
    %v229 = vsel %vm228, %v221, %v225
    %v230 = vand.u32 2147483647, %v217
    %vm231 = vcmp.eq.f32.partialorder %v230, 8.507059e+37
    %v232 = vand.u32 %v217, 2147483648
    %v233 = vor.u32 1.1754944e-38, %v232
    %v234 = vsel %vm231, %v233, %v229
    %v235 = vmul.f32 %v198, %v234
    %v236 = vrcp.pop %v218
    %v237 = vmul.f32 %v218, %v236
    %v238 = vsub.f32 1.0, %v237
    %v239 = vmul.f32 %v236, %v238
    %v240 = vadd.f32 %v236, %v239
    %vm241 = vweird.f32 %v218
    %vm242 = vweird.f32 %v236
    %vm243 = vmor %vm241, %vm242
    %v244 = vsel %vm243, %v236, %v240
    %v245 = vand.u32 2147483647, %v218
    %vm246 = vcmp.eq.f32.partialorder %v245, 8.507059e+37
    %v247 = vand.u32 %v218, 2147483648
    %v248 = vor.u32 1.1754944e-38, %v247
    %v249 = vsel %vm246, %v248, %v244
    %v250 = vmul.f32 %v200, %v249
    %253 = vset.pattern.permute.xlu0 0
    %254 = vperm.xlu0 %253, %v235
    %v255 = vpop.permute.xlu0 %254
    %256 = vset.pattern.permute.xlu0 0
    %257 = vperm.xlu0 %256, %v250
    %v258 = vpop.permute.xlu0 %257
    %v259 = vperm.slane %v255, %v180
    %v260 = vperm.slane %v258, %v180
    %v261 = vsel %vm183, %v260, %v259
    %263 = vst.msk [vmem:[#allocation11] sm:$0x3] %vm186, %v261
    %v264 = vld [vmem:[#allocation2] sm:$0xff]
    %v265 = vld [vmem:[#allocation2 + $0x8] sm:$0xff]
    %v268 = vmul.f32 %v264, %v255
    %v269 = vmul.f32 %v265, %v258
    %v270 = vsel %vm126, %v268, 0.0
    %v271 = vrot.slane %v270, 4
    %v272 = vadd.f32 %v270, %v271
    %v273 = vrot.slane %v272, 2
    %v274 = vadd.f32 %v272, %v273
    %v275 = vrot.slane %v274, 1
    %v276 = vadd.f32 %v274, %v275
    %v277 = vsel %vm126, %v269, 0.0
    %v278 = vrot.slane %v277, 4
    %v279 = vadd.f32 %v277, %v278
    %v280 = vrot.slane %v279, 2
    %v281 = vadd.f32 %v279, %v280
    %v282 = vrot.slane %v281, 1
    %v283 = vadd.f32 %v281, %v282
    %v284 = vadd.f32 %v276, 0.0
    %v285 = vadd.f32 %v283, 0.0
    %v288 = vsel %vm183, %v285, %v284
    %vm290 = vcmask 254976
    %291 = vst.msk [vmem:[#allocation10] sm:$0x3] %vm290, %v288
    // Predicated region
    $region42: #{tpu_custom_call.1} parent=1 // pred_check
      _
    $region43: #{tpu_custom_call.1} parent=1 // pred_check_branch
      %293 = sbr.rel (0) target = $region45
    $region44: #{tpu_custom_call.1} parent=1 // pred_region
      %295 = vsyncadd [#allocation4], 0
      %s297 = sshll.u32 [#allocation10], 4
      %s298 = int_to_ptr.vmem [resolvable:$true] %s297
      %s299 = sshll.u32 %s6, 4
      %s300 = int_to_ptr.hbm [resolvable:$true] %s299
      %302 = dma.vmem_to_hbm [thread:$0]  %s298, 32, %s300, [#allocation4]
    $region45: #{tpu_custom_call.1} parent=1 // pred_fallthru
      _
    // Predicated region
    $region46: #{tpu_custom_call.1} parent=1 // pred_check
      _
    $region47: #{tpu_custom_call.1} parent=1 // pred_check_branch
      %304 = sbr.rel (0) target = $region49
    $region48: #{tpu_custom_call.1} parent=1 // pred_region
      %306 = vsyncadd [#allocation12], 0
      %s308 = sshll.u32 [#allocation11], 4
      %s309 = int_to_ptr.vmem [resolvable:$true] %s308
      %s310 = sshll.u32 %s7, 4
      %s311 = int_to_ptr.hbm [resolvable:$true] %s310
      %313 = dma.vmem_to_hbm [thread:$0]  %s309, 32, %s311, [#allocation12]
    $region49: #{tpu_custom_call.1} parent=1 // pred_fallthru
      _
    // Predicated region
    $region50: #{tpu_custom_call.1} parent=1 // pred_check
      _
    $region51: #{tpu_custom_call.1} parent=1 // pred_check_branch
      %315 = sbr.rel (0) target = $region53
    $region52: #{tpu_custom_call.1} parent=1 // pred_region
      %317 = dma.done [#allocation4], 32
    $region53: #{tpu_custom_call.1} parent=1 // pred_fallthru
      _
    // Predicated region
    $region54: #{tpu_custom_call.1} parent=1 // pred_check
      _
    $region55: #{tpu_custom_call.1} parent=1 // pred_check_branch
      %319 = sbr.rel (0) target = $region57
    $region56: #{tpu_custom_call.1} parent=1 // pred_region
      %321 = dma.done [#allocation12], 32
    $region57: #{tpu_custom_call.1} parent=1 // pred_fallthru
      _
    %322 = vsyncpa [#allocation3], 1
    %323 = vsyncpa [#allocation6], 1
    %324 = vsyncpa [#allocation9], 1
    %325 = vsyncpa [#allocation4], 1
    %326 = vsyncpa [#allocation12], 1

</llo_original>
